<compile_context>
chip_gen: v5e
topology: v5e:2x2
jax: 0.10.0
libtpu: 0.0.40
codegen_flags: <defaults>
</compile_context>

<pallas_src>
import jax
import jax.numpy as jnp
from jax.experimental import pallas as pl
from jax.experimental.pallas import tpu as pltpu

_LANE = 128       # vreg lane width; last dim of every tile
_CHUNK = 512      # rows folded per inner-loop iteration (bounds i32 temps)


def _make_cm_kernel(*, block_rows, steps, last_rows):
    """Kernel accumulating per-lane partial sums of l, p and (l & p).

    Inputs are (block_rows, 128) int8 tiles holding 0/1 values.  Outputs are
    three (8, 128) int32 per-lane accumulators whose block index ignores the
    reduction grid axis (so they stay resident across it).
    """

    def fold_into(lab, prd, out_l, out_p, out_lp):
        rows = lab.shape[0]
        lp = lab & prd
        if rows % 8 == 0:
            g = rows // 8
            out_l[...] += jnp.sum(
                lab.reshape(g, 8, _LANE).astype(jnp.int32), axis=0)
            out_p[...] += jnp.sum(
                prd.reshape(g, 8, _LANE).astype(jnp.int32), axis=0)
            out_lp[...] += jnp.sum(
                lp.reshape(g, 8, _LANE).astype(jnp.int32), axis=0)
        else:
            # Non-multiple-of-8 remainder: one small sublane reduction, added
            # to an arbitrary accumulator row (the wrapper sums all rows).
            out_l[0:1, :] += jnp.sum(lab.astype(jnp.int32), axis=0,
                                     keepdims=True)
            out_p[0:1, :] += jnp.sum(prd.astype(jnp.int32), axis=0,
                                     keepdims=True)
            out_lp[0:1, :] += jnp.sum(lp.astype(jnp.int32), axis=0,
                                      keepdims=True)

    def accum(lab_ref, prd_ref, rows, out_l, out_p, out_lp):
        # Chunked fold: bounds int32 temporaries to (_CHUNK, 128) per stream
        # instead of materializing (block_rows, 128) int32 intermediates.
        n_full = rows // _CHUNK
        rem = rows - n_full * _CHUNK
        if n_full > 0:
            def body(c, carry):
                off = pl.multiple_of(c * _CHUNK, _CHUNK)
                fold_into(lab_ref[pl.ds(off, _CHUNK), :],
                          prd_ref[pl.ds(off, _CHUNK), :],
                          out_l, out_p, out_lp)
                return carry
            jax.lax.fori_loop(0, n_full, body, 0)
        if rem > 0:
            off = n_full * _CHUNK                      # static
            fold_into(lab_ref[pl.ds(off, rem), :],
                      prd_ref[pl.ds(off, rem), :],
                      out_l, out_p, out_lp)

    def kernel(lab_ref, prd_ref, out_l, out_p, out_lp):
        step = pl.program_id(1)
        last = steps - 1

        @pl.when(step == 0)
        def _():
            out_l[...] = jnp.zeros_like(out_l)
            out_p[...] = jnp.zeros_like(out_p)
            out_lp[...] = jnp.zeros_like(out_lp)

        if last_rows == block_rows:
            accum(lab_ref, prd_ref, block_rows, out_l, out_p, out_lp)
        else:
            # Only the last row-block of each pair is partial; its valid row
            # count is a compile-time constant, so no iota/compare masking.
            @pl.when(step < last)
            def _():
                accum(lab_ref, prd_ref, block_rows, out_l, out_p, out_lp)

            @pl.when(step == last)
            def _():
                accum(lab_ref, prd_ref, last_rows, out_l, out_p, out_lp)

    return kernel


def _cm_lane_sums(lab3, prd3, *, max_block_rows=8192):
    """Runs the kernel; returns (B, 3) int32 [S_l, S_p, S_lp] per pair."""
    B, R, L = lab3.shape
    assert L == _LANE and prd3.shape == lab3.shape

    # Row-block size: as large as possible (amortizes the per-step overhead)
    # while staying a multiple of 32 (int8 sublane packing) unless a single
    # block covers the whole array.  8192 rows -> 1 MiB int8 per input block,
    # 4 MiB double-buffered: well under the scoped-VMEM default on all gens.
    mbr = max(32, (max_block_rows // 32) * 32)
    if R <= mbr:
        br, steps = R, 1
    else:
        br = mbr
        steps = -(-R // br)
    last_rows = R - (steps - 1) * br

    kernel = _make_cm_kernel(block_rows=br, steps=steps, last_rows=last_rows)

    out_part = jax.ShapeDtypeStruct((B, 8, _LANE), jnp.int32)
    part_spec = pl.BlockSpec((None, 8, _LANE), lambda b, i: (b, 0, 0))
    in_spec = pl.BlockSpec((None, br, _LANE), lambda b, i: (b, i, 0))

    part_l, part_p, part_lp = pl.pallas_call(
        kernel,
        out_shape=(out_part, out_part, out_part),
        grid=(B, steps),
        in_specs=[in_spec, in_spec],
        out_specs=(part_spec, part_spec, part_spec),
        compiler_params=pltpu.CompilerParams(
            dimension_semantics=("parallel", "arbitrary")),
    )(lab3, prd3)

    s_l = jnp.sum(part_l.reshape(B, -1), axis=1)
    s_p = jnp.sum(part_p.reshape(B, -1), axis=1)
    s_lp = jnp.sum(part_lp.reshape(B, -1), axis=1)
    return jnp.stack([s_l, s_p, s_lp], axis=1)


def confusion_counts(labels, preds, *, max_block_rows=8192):
    """[TP, FP, TN, FN] for one (labels, preds) pair of 0/1 values.

    NOTE: assumes strictly binary 0/1 inputs (what DatanodeCMMetric's binary
    branch produces); other values are not special-cased.
    """
    labels = jnp.ravel(labels).astype(jnp.int8)
    preds = jnp.ravel(preds).astype(jnp.int8)
    n = labels.shape[0]
    r = n // _LANE
    t = n - r * _LANE

    s_l = jnp.int32(0)
    s_p = jnp.int32(0)
    s_lp = jnp.int32(0)

    if r > 0:
        # Lane-aligned prefix goes through the kernel; no full-array zero-pad.
        if t:
            lab_pref = labels[: r * _LANE]
            prd_pref = preds[: r * _LANE]
        else:
            lab_pref, prd_pref = labels, preds
        sums = _cm_lane_sums(lab_pref.reshape(1, r, _LANE),
                             prd_pref.reshape(1, r, _LANE),
                             max_block_rows=max_block_rows)
        s_l, s_p, s_lp = sums[0, 0], sums[0, 1], sums[0, 2]

    if t > 0:
        # <128-element tail: tiny plain-JAX correction instead of padding and
        # re-copying the whole array in HBM when n is lane-unaligned.
        tl = labels[r * _LANE:].astype(jnp.int32)
        tpred = preds[r * _LANE:].astype(jnp.int32)
        s_l = s_l + jnp.sum(tl)
        s_p = s_p + jnp.sum(tpred)
        s_lp = s_lp + jnp.sum(tl * tpred)

    tp = s_lp
    fp = s_p - s_lp
    fn = s_l - s_lp
    tn = n - s_l - s_p + s_lp
    return jnp.stack([tp, fp, tn, fn]).astype(jnp.int32)


def confusion_counts_batched(labels, preds, lengths=None, *, max_block_rows=8192):
    """Confusion counts for B (labels, preds) pairs in ONE pallas_call.

    labels/preds: (B, N) 0/1 arrays (one row per datanode property); entries
    at column >= lengths[b] must be 0.  Returns (B, 4) int32 [TP, FP, TN, FN].
    Batching amortizes the per-call dispatch overhead that dominates for the
    module's typical small per-property metric vectors, and the batch axis is
    'parallel' so v7x's two TensorCores split it.
    """
    labels = jnp.asarray(labels).astype(jnp.int8)
    preds = jnp.asarray(preds).astype(jnp.int8)
    B, N = labels.shape
    pad = (-N) % _LANE
    if pad:
        # Zero pad contributes nothing to S_l / S_p / S_lp; TN uses `lengths`.
        labels = jnp.pad(labels, ((0, 0), (0, pad)))
        preds = jnp.pad(preds, ((0, 0), (0, pad)))
    R = (N + pad) // _LANE
    sums = _cm_lane_sums(labels.reshape(B, R, _LANE),
                         preds.reshape(B, R, _LANE),
                         max_block_rows=max_block_rows)
    if lengths is None:
        n_b = jnp.full((B,), N, jnp.int32)
    else:
        n_b = jnp.asarray(lengths, jnp.int32)
    s_l, s_p, s_lp = sums[:, 0], sums[:, 1], sums[:, 2]
    tp = s_lp
    fp = s_p - s_lp
    fn = s_l - s_lp
    tn = n_b - s_l - s_p + s_lp
    return jnp.stack([tp, fp, tn, fn], axis=1)


def datanode_cm_metric_forward(labels, preds):
    """Mirrors DatanodeCMMetric.forward's binary-class return value.

    The sklearn confusion_matrix special-case (conf_mat.size == 1) in the
    module collapses to exactly these direct counts, so both branches are
    reproduced by the single kernel.
    """
    counts = confusion_counts(labels, preds)
    return {'TP': counts[0], 'FP': counts[1], 'TN': counts[2], 'FN': counts[3]}


def _reference_counts(labels, preds):
    l = labels.astype(jnp.int32)
    p = preds.astype(jnp.int32)
    tp = int(jnp.sum((l == 1) & (p == 1)))
    fp = int(jnp.sum((l == 0) & (p == 1)))
    tn = int(jnp.sum((l == 0) & (p == 0)))
    fn = int(jnp.sum((l == 1) & (p == 0)))
    return tp, fp, tn, fn


if __name__ == "__main__":
    key = jax.random.PRNGKey(0)
    ks = jax.random.split(key, 8)

    # 1) Small per-property metric vector (typical DatanodeCMMetric workload).
    n = 200
    labels = jax.random.bernoulli(ks[0], 0.5, (n,)).astype(jnp.int8)
    preds = jax.random.bernoulli(ks[1], 0.6, (n,)).astype(jnp.int8)
    out = jax.block_until_ready(datanode_cm_metric_forward(labels, preds))
    ref = _reference_counts(labels, preds)
    got = (int(out['TP']), int(out['FP']), int(out['TN']), int(out['FN']))
    assert got == ref, (got, ref)

    # 2) Multi-row-block path with a partial (<8-row) last block.
    n2 = 5000
    labels2 = jax.random.bernoulli(ks[2], 0.4, (n2,)).astype(jnp.int8)
    preds2 = jax.random.bernoulli(ks[3], 0.7, (n2,)).astype(jnp.int8)
    counts2 = jax.block_until_ready(
        confusion_counts(labels2, preds2, max_block_rows=32))
    assert tuple(int(c) for c in counts2) == _reference_counts(labels2, preds2)

    # 3) Chunked in-kernel fold (R > _CHUNK) plus a lane tail.
    n3 = 1100 * 128 + 57
    labels3 = jax.random.bernoulli(ks[4], 0.3, (n3,)).astype(jnp.int8)
    preds3 = jax.random.bernoulli(ks[5], 0.5, (n3,)).astype(jnp.int8)
    counts3 = jax.block_until_ready(confusion_counts(labels3, preds3))
    assert tuple(int(c) for c in counts3) == _reference_counts(labels3, preds3)

    # 4) Batched path (several properties in one pallas_call, ragged lengths).
    B, N = 3, 300
    lens = jnp.array([300, 257, 128], jnp.int32)
    lab_b = jax.random.bernoulli(ks[6], 0.5, (B, N)).astype(jnp.int8)
    prd_b = jax.random.bernoulli(ks[7], 0.5, (B, N)).astype(jnp.int8)
    valid = (jnp.arange(N)[None, :] < lens[:, None])
    lab_b = jnp.where(valid, lab_b, 0).astype(jnp.int8)
    prd_b = jnp.where(valid, prd_b, 0).astype(jnp.int8)
    counts_b = jax.block_until_ready(
        confusion_counts_batched(lab_b, prd_b, lens))
    for b in range(B):
        nb = int(lens[b])
        refb = _reference_counts(lab_b[b, :nb], prd_b[b, :nb])
        gotb = tuple(int(c) for c in counts_b[b])
        assert gotb == refb, (b, gotb, refb)

    print("KERNEL_OK")
</pallas_src>

<mosaic_0001>
module attributes {stable_mosaic.version = 11 : i64} {
  func.func @kernel(%arg0: i32, %arg1: i32, %arg2: memref<1x1x128xi8, #tpu.memory_space<vmem>>, %arg3: memref<1x1x128xi8, #tpu.memory_space<vmem>>, %arg4: memref<1x8x128xi32, #tpu.memory_space<vmem>>, %arg5: memref<1x8x128xi32, #tpu.memory_space<vmem>>, %arg6: memref<1x8x128xi32, #tpu.memory_space<vmem>>) attributes {dimension_semantics = [#tpu.dimension_semantics<parallel>, #tpu.dimension_semantics<arbitrary>], iteration_bounds = array<i64: 1, 1>, scalar_prefetch = 0 : i64, scratch_operands = 0 : i64, tpu.core_type = #tpu.core_type<tc>, window_params = [{transform_indices = @transform_0, window_bounds = array<i64: 1, 1, 128>}, {transform_indices = @transform_1, window_bounds = array<i64: 1, 1, 128>}, {transform_indices = @transform_2, window_bounds = array<i64: 1, 8, 128>}, {transform_indices = @transform_3, window_bounds = array<i64: 1, 8, 128>}, {transform_indices = @transform_4, window_bounds = array<i64: 1, 8, 128>}]} {
    %c0_i32 = arith.constant 0 : i32
    %0 = arith.cmpi eq, %arg1, %c0_i32 : i32
    %1 = arith.extui %0 : i1 to i32
    %c0_i32_0 = arith.constant 0 : i32
    %2 = arith.cmpi ne, %1, %c0_i32_0 : i32
    scf.if %2 {
      %c0_i32_26 = arith.constant 0 : i32
      %35 = vector.broadcast %c0_i32_26 : i32 to vector<8x128xi32>
      %c0_27 = arith.constant 0 : index
      %c0_28 = arith.constant 0 : index
      %c0_29 = arith.constant 0 : index
      %36 = vector.load %arg4[%c0_27, %c0_28, %c0_29] : memref<1x8x128xi32, #tpu.memory_space<vmem>>, vector<1x8x128xi32>
      %37 = vector.shape_cast %36 : vector<1x8x128xi32> to vector<8x128xi32>
      %38 = vector.shape_cast %35 : vector<8x128xi32> to vector<1x8x128xi32>
      tpu.vector_store %arg4[%c0_27, %c0_28, %c0_29], %38 {strides = array<i32>} : memref<1x8x128xi32, #tpu.memory_space<vmem>>, vector<1x8x128xi32>,
      %c0_i32_30 = arith.constant 0 : i32
      %39 = vector.broadcast %c0_i32_30 : i32 to vector<8x128xi32>
      %c0_31 = arith.constant 0 : index
      %c0_32 = arith.constant 0 : index
      %c0_33 = arith.constant 0 : index
      %40 = vector.load %arg5[%c0_31, %c0_32, %c0_33] : memref<1x8x128xi32, #tpu.memory_space<vmem>>, vector<1x8x128xi32>
      %41 = vector.shape_cast %40 : vector<1x8x128xi32> to vector<8x128xi32>
      %42 = vector.shape_cast %39 : vector<8x128xi32> to vector<1x8x128xi32>
      tpu.vector_store %arg5[%c0_31, %c0_32, %c0_33], %42 {strides = array<i32>} : memref<1x8x128xi32, #tpu.memory_space<vmem>>, vector<1x8x128xi32>,
      %c0_i32_34 = arith.constant 0 : i32
      %43 = vector.broadcast %c0_i32_34 : i32 to vector<8x128xi32>
      %c0_35 = arith.constant 0 : index
      %c0_36 = arith.constant 0 : index
      %c0_37 = arith.constant 0 : index
      %44 = vector.load %arg6[%c0_35, %c0_36, %c0_37] : memref<1x8x128xi32, #tpu.memory_space<vmem>>, vector<1x8x128xi32>
      %45 = vector.shape_cast %44 : vector<1x8x128xi32> to vector<8x128xi32>
      %46 = vector.shape_cast %43 : vector<8x128xi32> to vector<1x8x128xi32>
      tpu.vector_store %arg6[%c0_35, %c0_36, %c0_37], %46 {strides = array<i32>} : memref<1x8x128xi32, #tpu.memory_space<vmem>>, vector<1x8x128xi32>,
    } else {
    }
    %c0 = arith.constant 0 : index
    %c0_1 = arith.constant 0 : index
    %c0_2 = arith.constant 0 : index
    %3 = vector.load %arg2[%c0, %c0_1, %c0_2] : memref<1x1x128xi8, #tpu.memory_space<vmem>>, vector<1x1x128xi8>
    %4 = vector.shape_cast %3 : vector<1x1x128xi8> to vector<1x128xi8>
    %c0_3 = arith.constant 0 : index
    %c0_4 = arith.constant 0 : index
    %c0_5 = arith.constant 0 : index
    %5 = vector.load %arg3[%c0_3, %c0_4, %c0_5] : memref<1x1x128xi8, #tpu.memory_space<vmem>>, vector<1x1x128xi8>
    %6 = vector.shape_cast %5 : vector<1x1x128xi8> to vector<1x128xi8>
    %7 = arith.andi %4, %6 : vector<1x128xi8>
    %c0_6 = arith.constant 0 : index
    %c0_7 = arith.constant 0 : index
    %c0_8 = arith.constant 0 : index
    %8 = vector.load %arg4[%c0_6, %c0_7, %c0_8] : memref<1x8x128xi32, #tpu.memory_space<vmem>>, vector<1x1x128xi32>
    %9 = vector.shape_cast %8 : vector<1x1x128xi32> to vector<1x128xi32>
    %10 = arith.extsi %4 : vector<1x128xi8> to vector<1x128xi32>
    %cst = arith.constant dense<0> : vector<128xi32>
    %11 = vector.multi_reduction <add>, %10, %cst [0] : vector<1x128xi32> to vector<128xi32>
    %12 = vector.shape_cast %11 : vector<128xi32> to vector<1x128xi32>
    %13 = arith.addi %9, %12 : vector<1x128xi32>
    %c0_9 = arith.constant 0 : index
    %c0_10 = arith.constant 0 : index
    %c0_11 = arith.constant 0 : index
    %14 = vector.load %arg4[%c0_9, %c0_10, %c0_11] : memref<1x8x128xi32, #tpu.memory_space<vmem>>, vector<1x1x128xi32>
    %15 = vector.shape_cast %14 : vector<1x1x128xi32> to vector<1x128xi32>
    %16 = vector.shape_cast %13 : vector<1x128xi32> to vector<1x1x128xi32>
    tpu.vector_store %arg4[%c0_9, %c0_10, %c0_11], %16 {strides = array<i32>} : memref<1x8x128xi32, #tpu.memory_space<vmem>>, vector<1x1x128xi32>,
    %c0_12 = arith.constant 0 : index
    %c0_13 = arith.constant 0 : index
    %c0_14 = arith.constant 0 : index
    %17 = vector.load %arg5[%c0_12, %c0_13, %c0_14] : memref<1x8x128xi32, #tpu.memory_space<vmem>>, vector<1x1x128xi32>
    %18 = vector.shape_cast %17 : vector<1x1x128xi32> to vector<1x128xi32>
    %19 = arith.extsi %6 : vector<1x128xi8> to vector<1x128xi32>
    %cst_15 = arith.constant dense<0> : vector<128xi32>
    %20 = vector.multi_reduction <add>, %19, %cst_15 [0] : vector<1x128xi32> to vector<128xi32>
    %21 = vector.shape_cast %20 : vector<128xi32> to vector<1x128xi32>
    %22 = arith.addi %18, %21 : vector<1x128xi32>
    %c0_16 = arith.constant 0 : index
    %c0_17 = arith.constant 0 : index
    %c0_18 = arith.constant 0 : index
    %23 = vector.load %arg5[%c0_16, %c0_17, %c0_18] : memref<1x8x128xi32, #tpu.memory_space<vmem>>, vector<1x1x128xi32>
    %24 = vector.shape_cast %23 : vector<1x1x128xi32> to vector<1x128xi32>
    %25 = vector.shape_cast %22 : vector<1x128xi32> to vector<1x1x128xi32>
    tpu.vector_store %arg5[%c0_16, %c0_17, %c0_18], %25 {strides = array<i32>} : memref<1x8x128xi32, #tpu.memory_space<vmem>>, vector<1x1x128xi32>,
    %c0_19 = arith.constant 0 : index
    %c0_20 = arith.constant 0 : index
    %c0_21 = arith.constant 0 : index
    %26 = vector.load %arg6[%c0_19, %c0_20, %c0_21] : memref<1x8x128xi32, #tpu.memory_space<vmem>>, vector<1x1x128xi32>
    %27 = vector.shape_cast %26 : vector<1x1x128xi32> to vector<1x128xi32>
    %28 = arith.extsi %7 : vector<1x128xi8> to vector<1x128xi32>
    %cst_22 = arith.constant dense<0> : vector<128xi32>
    %29 = vector.multi_reduction <add>, %28, %cst_22 [0] : vector<1x128xi32> to vector<128xi32>
    %30 = vector.shape_cast %29 : vector<128xi32> to vector<1x128xi32>
    %31 = arith.addi %27, %30 : vector<1x128xi32>
    %c0_23 = arith.constant 0 : index
    %c0_24 = arith.constant 0 : index
    %c0_25 = arith.constant 0 : index
    %32 = vector.load %arg6[%c0_23, %c0_24, %c0_25] : memref<1x8x128xi32, #tpu.memory_space<vmem>>, vector<1x1x128xi32>
    %33 = vector.shape_cast %32 : vector<1x1x128xi32> to vector<1x128xi32>
    %34 = vector.shape_cast %31 : vector<1x128xi32> to vector<1x1x128xi32>
    tpu.vector_store %arg6[%c0_23, %c0_24, %c0_25], %34 {strides = array<i32>} : memref<1x8x128xi32, #tpu.memory_space<vmem>>, vector<1x1x128xi32>,
    return
  }
  func.func @transform_0(%arg0: i32, %arg1: i32) -> (i32, i32, i32) {
    %c0_i32 = arith.constant 0 : i32
    %c0_i32_0 = arith.constant 0 : i32
    return %arg0, %arg1, %c0_i32 : i32, i32, i32
  }
  func.func @transform_1(%arg0: i32, %arg1: i32) -> (i32, i32, i32) {
    %c0_i32 = arith.constant 0 : i32
    %c0_i32_0 = arith.constant 0 : i32
    return %arg0, %arg1, %c0_i32 : i32, i32, i32
  }
  func.func @transform_2(%arg0: i32, %arg1: i32) -> (i32, i32, i32) {
    %c0_i32 = arith.constant 0 : i32
    %c0_i32_0 = arith.constant 0 : i32
    %c0_i32_1 = arith.constant 0 : i32
    return %arg0, %c0_i32, %c0_i32_0 : i32, i32, i32
  }
  func.func @transform_3(%arg0: i32, %arg1: i32) -> (i32, i32, i32) {
    %c0_i32 = arith.constant 0 : i32
    %c0_i32_0 = arith.constant 0 : i32
    %c0_i32_1 = arith.constant 0 : i32
    return %arg0, %c0_i32, %c0_i32_0 : i32, i32, i32
  }
  func.func @transform_4(%arg0: i32, %arg1: i32) -> (i32, i32, i32) {
    %c0_i32 = arith.constant 0 : i32
    %c0_i32_0 = arith.constant 0 : i32
    %c0_i32_1 = arith.constant 0 : i32
    return %arg0, %c0_i32, %c0_i32_0 : i32, i32, i32
  }
}

</mosaic_0001>

<llo_original>
// kernel: tpu_custom_call.1
$region0: #{tpu_custom_call.1}
  #allocation0 [shape = 'u32[]', space=smem, size = 0x4, offset = 0x4, fixed_abs, tag = 'smem constant byte address 0x4 - core index']
  #allocation1 [shape = 'u32[72,128]{1,0:T(1,128)}', space=vmem, size = 0x9000, scoped, tag = 'internal scratch']
  %s0 = inlined_call_operand.hbm [shape: s8[1,1,128], index: 0, kind: input, shape index: {}]
  %s1 = inlined_call_operand.hbm [shape: s8[1,1,128], index: 1, kind: input, shape index: {}]
  %s2 = inlined_call_operand.hbm [shape: s32[1,8,128], index: 2, kind: output, shape index: {0}]
  %s3 = inlined_call_operand.hbm [shape: s32[1,8,128], index: 3, kind: output, shape index: {1}]
  %s4 = inlined_call_operand.hbm [shape: s32[1,8,128], index: 4, kind: output, shape index: {2}]
  %5 = xla_tuple %s2, %s3, %s4
  %s6 = sld [smem:[#allocation0]]
  $region46: #{tpu_custom_call.1} parent=0
    _
  %s8 = ssub.s32 1, %s6
  %s9 = scalar_select 0, %s8, %s6
  $region1: #{tpu_custom_call.1} parent=0
    #allocation2 [shape = 'u8[512]{0}', space=vmem, size = 0x400, scoped, tag = 'input window, operand 0, single buffered']
    #allocation3 [shape = 's32[1]{0}', space=sflag, size = 0x4, scoped, tag = 'scoped memory for tpu_custom_call.1']
    #allocation4 [shape = 's32[1]{0}', space=sflag, size = 0x4, scoped, tag = 'scoped memory for tpu_custom_call.1']
    #allocation5 [shape = 'u8[512]{0}', space=vmem, size = 0x400, scoped, tag = 'input window, operand 1, single buffered']
    #allocation6 [shape = 's32[1]{0}', space=sflag, size = 0x4, scoped, tag = 'scoped memory for tpu_custom_call.1']
    #allocation7 [shape = 'u8[4096]{0}', space=vmem, size = 0x1000, scoped, tag = 'output window, operand 0, single buffered']
    #allocation8 [shape = 'u8[4096]{0}', space=vmem, size = 0x1000, scoped, tag = 'output window, operand 1, single buffered']
    #allocation9 [shape = 's32[1]{0}', space=sflag, size = 0x4, scoped, tag = 'scoped memory for tpu_custom_call.1']
    #allocation10 [shape = 'u8[4096]{0}', space=vmem, size = 0x1000, scoped, tag = 'output window, operand 2, single buffered']
    %10 = vsyncpa [#allocation3], 0
    %11 = vsyncpa [#allocation6], 0
    %12 = vsyncpa [#allocation4], 0
    %13 = vsyncpa [#allocation9], 0
    // Predicated region
    $region2: #{tpu_custom_call.1} parent=1 // pred_check
      _
    $region3: #{tpu_custom_call.1} parent=1 // pred_check_branch
      %15 = sbr.rel (0) target = $region5
    $region4: #{tpu_custom_call.1} parent=1 // pred_region
      %17 = vsyncadd [#allocation3], 0
      %s19 = sshll.u32 %s0, 4
      %s20 = int_to_ptr.hbm [resolvable:$true] %s19
      %s21 = sshll.u32 [#allocation2], 4
      %s22 = int_to_ptr.vmem [resolvable:$true] %s21
      %24 = dma.hbm_to_vmem [thread:$0]  %s20, 16, %s22, [#allocation3]
    $region5: #{tpu_custom_call.1} parent=1 // pred_fallthru
      _
    // Predicated region
    $region6: #{tpu_custom_call.1} parent=1 // pred_check
      _
    $region7: #{tpu_custom_call.1} parent=1 // pred_check_branch
      %26 = sbr.rel (0) target = $region9
    $region8: #{tpu_custom_call.1} parent=1 // pred_region
      %28 = vsyncadd [#allocation6], 0
      %s30 = sshll.u32 %s1, 4
      %s31 = int_to_ptr.hbm [resolvable:$true] %s30
      %s32 = sshll.u32 [#allocation5], 4
      %s33 = int_to_ptr.vmem [resolvable:$true] %s32
      %35 = dma.hbm_to_vmem [thread:$0]  %s31, 16, %s33, [#allocation6]
    $region9: #{tpu_custom_call.1} parent=1 // pred_fallthru
      _
    // Predicated region
    $region10: #{tpu_custom_call.1} parent=1 // pred_check
      _
    $region11: #{tpu_custom_call.1} parent=1 // pred_check_branch
      %37 = sbr.rel (0) target = $region13
    $region12: #{tpu_custom_call.1} parent=1 // pred_region
      %39 = dma.done [#allocation3], 16
    $region13: #{tpu_custom_call.1} parent=1 // pred_fallthru
      _
    // Predicated region
    $region14: #{tpu_custom_call.1} parent=1 // pred_check
      _
    $region15: #{tpu_custom_call.1} parent=1 // pred_check_branch
      %41 = sbr.rel (0) target = $region17
    $region16: #{tpu_custom_call.1} parent=1 // pred_region
      %43 = dma.done [#allocation6], 16
    $region17: #{tpu_custom_call.1} parent=1 // pred_fallthru
      _
    %p44 = scmp.eq.s32.totalorder 0, 0
    // Predicated region
    $region18: #{tpu_custom_call.1} parent=1 // pred_check
      %p45 = pneg %p44
    $region19: #{tpu_custom_call.1} parent=1 // pred_check_branch
      %47 = sbr.rel (%p45) target = $region21
    $region20: #{tpu_custom_call.1} parent=1 // pred_region
      %48 = vst [vmem:[#allocation7] sm:$0xff] 0
      %49 = vst [vmem:[#allocation8] sm:$0xff] 0
      %50 = vst [vmem:[#allocation10] sm:$0xff] 0
    $region21: #{tpu_custom_call.1} parent=1 // pred_fallthru
      _
    %v51 = vld [vmem:[#allocation2] sm:$0x1]
    %v52 = vld [vmem:[#allocation5] sm:$0x1]
    %v53 = vand.u32 %v51, %v52
    %v54 = vld [vmem:[#allocation7] sm:$0x1]
    %v55 = vunpack.c.0.s8 %v51
    %v56 = vadd.s32 %v54, %v55
    %57 = vst [vmem:[#allocation7] sm:$0x1] %v56
    %v58 = vld [vmem:[#allocation8] sm:$0x1]
    %v59 = vunpack.c.0.s8 %v52
    %v60 = vadd.s32 %v58, %v59
    %61 = vst [vmem:[#allocation8] sm:$0x1] %v60
    %v62 = vld [vmem:[#allocation10] sm:$0x1]
    %v63 = vunpack.c.0.s8 %v53
    %v64 = vadd.s32 %v62, %v63
    %65 = vst [vmem:[#allocation10] sm:$0x1] %v64
    // Predicated region
    $region22: #{tpu_custom_call.1} parent=1 // pred_check
      _
    $region23: #{tpu_custom_call.1} parent=1 // pred_check_branch
      %67 = sbr.rel (0) target = $region25
    $region24: #{tpu_custom_call.1} parent=1 // pred_region
      %69 = vsyncadd [#allocation4], 0
      %s71 = sshll.u32 [#allocation7], 4
      %s72 = int_to_ptr.vmem [resolvable:$true] %s71
      %s73 = sshll.u32 %s2, 4
      %s74 = int_to_ptr.hbm [resolvable:$true] %s73
      %76 = dma.vmem_to_hbm [thread:$0]  %s72, 128, %s74, [#allocation4]
    $region25: #{tpu_custom_call.1} parent=1 // pred_fallthru
      _
    // Predicated region
    $region26: #{tpu_custom_call.1} parent=1 // pred_check
      _
    $region27: #{tpu_custom_call.1} parent=1 // pred_check_branch
      %78 = sbr.rel (0) target = $region29
    $region28: #{tpu_custom_call.1} parent=1 // pred_region
      %80 = vsyncadd [#allocation9], 0
      %s82 = sshll.u32 [#allocation8], 4
      %s83 = int_to_ptr.vmem [resolvable:$true] %s82
      %s84 = sshll.u32 %s3, 4
      %s85 = int_to_ptr.hbm [resolvable:$true] %s84
      %87 = dma.vmem_to_hbm [thread:$0]  %s83, 128, %s85, [#allocation9]
    $region29: #{tpu_custom_call.1} parent=1 // pred_fallthru
      _
    // Predicated region
    $region30: #{tpu_custom_call.1} parent=1 // pred_check
      _
    $region31: #{tpu_custom_call.1} parent=1 // pred_check_branch
      %89 = sbr.rel (0) target = $region33
    $region32: #{tpu_custom_call.1} parent=1 // pred_region
      %91 = vsyncadd [#allocation9], 0
      %s93 = sshll.u32 [#allocation10], 4
      %s94 = int_to_ptr.vmem [resolvable:$true] %s93
      %s95 = sshll.u32 %s4, 4
      %s96 = int_to_ptr.hbm [resolvable:$true] %s95
      %98 = dma.vmem_to_hbm [thread:$0]  %s94, 128, %s96, [#allocation9]
    $region33: #{tpu_custom_call.1} parent=1 // pred_fallthru
      _
    // Predicated region
    $region34: #{tpu_custom_call.1} parent=1 // pred_check
      _
    $region35: #{tpu_custom_call.1} parent=1 // pred_check_branch
      %100 = sbr.rel (0) target = $region37
    $region36: #{tpu_custom_call.1} parent=1 // pred_region
      %102 = dma.done [#allocation4], 128
    $region37: #{tpu_custom_call.1} parent=1 // pred_fallthru
      _
    // Predicated region
    $region38: #{tpu_custom_call.1} parent=1 // pred_check
      _
    $region39: #{tpu_custom_call.1} parent=1 // pred_check_branch
      %104 = sbr.rel (0) target = $region41
    $region40: #{tpu_custom_call.1} parent=1 // pred_region
      %106 = dma.done [#allocation9], 128
    $region41: #{tpu_custom_call.1} parent=1 // pred_fallthru
      _
    // Predicated region
    $region42: #{tpu_custom_call.1} parent=1 // pred_check
      _
    $region43: #{tpu_custom_call.1} parent=1 // pred_check_branch
      %108 = sbr.rel (0) target = $region45
    $region44: #{tpu_custom_call.1} parent=1 // pred_region
      %110 = dma.done [#allocation9], 128
    $region45: #{tpu_custom_call.1} parent=1 // pred_fallthru
      _
    %111 = vsyncpa [#allocation3], 1
    %112 = vsyncpa [#allocation6], 1
    %113 = vsyncpa [#allocation4], 1
    %114 = vsyncpa [#allocation9], 1

</llo_original>
